<compile_context>
chip_gen: v5e
topology: v5e:2x2
jax: 0.10.0
libtpu: 0.0.40
codegen_flags: <defaults>
</compile_context>

<pallas_src>
import jax
import jax.numpy as jnp
import numpy as np
from jax.experimental import pallas as pl
from jax.experimental.pallas import tpu as pltpu

LN_EPS = 1e-5


def _score_kernel(hq_ref, k_ref, w1k_ref, vec_ref, out_ref):
    # hq_ref: (bt, D) f32 = Q @ W1_q^T + b1      k_ref: (bt, K_len, D)
    # w1k_ref: (D, D) = W1_k^T                   vec_ref: (4, D) = [gamma; beta; w2; b2]
    # out_ref: (bt, K_len)
    bt, kl, d = k_ref.shape

    gamma = vec_ref[0:1, :]                    # (1, D)
    beta = vec_ref[1:2, :]                     # (1, D)
    w2 = vec_ref[2:3, :]                       # (1, D)
    b2 = vec_ref[3:4, 0:1]                     # (1, 1)

    # K-side half of Linear(2D->D): one tall fused MXU matmul per grid step.
    k2d = k_ref[...].reshape(bt * kl, d)       # layout-free when K_len % 8 == 0
    hk = jnp.dot(k2d, w1k_ref[...], preferred_element_type=jnp.float32)
    h = hk.reshape(bt, kl, d) + hq_ref[...][:, None, :]       # add Q-side half (+b1)

    # LayerNorm over last dim (biased variance, eps=1e-5, affine); center once.
    mean = jnp.mean(h, axis=-1, keepdims=True)
    hc = h - mean
    var = jnp.mean(hc * hc, axis=-1, keepdims=True)
    hn = hc * jax.lax.rsqrt(var + LN_EPS) * gamma + beta

    # ReLU (Dropout -> identity at inference), then Linear(D->1) as a VPU multiply
    # + XLU lane reduction (keeps the MXU free).
    hr = jnp.maximum(hn, 0.0)
    s = jnp.sum(hr * w2, axis=-1) + b2                          # (bt, kl)
    out_ref[...] = s.astype(out_ref.dtype)


def _vmem_budget():
    """(scoped VMEM limit, tile budget) in bytes, per TPU generation."""
    try:
        cap = int(pltpu.get_tpu_info().vmem_capacity_bytes)   # 128 MiB v5e/v6e, 64 MiB v7x
    except Exception:
        cap = 64 * 1024 * 1024                                # conservative fallback
    limit = min(int(cap * 0.75), 96 * 1024 * 1024)            # leave headroom
    return limit, int(limit * 0.75)


def _round8(x):
    return max(8, (x // 8) * 8)


def _pick_b_tile(B, K_len, D, k_itemsize, tile_budget):
    """Largest batch tile (multiple of 8, or == B) that fits the VMEM budget,
    targeting ~2048 fused MXU rows (b_tile*K_len) per grid step."""
    dp = pl.cdiv(D, 128) * 128            # lane-padded D
    klp = pl.cdiv(K_len, 8) * 8           # sublane-padded K_len
    # Per-batch-row VMEM bytes: double-buffered K / hq / out tiles + ~3 f32 intermediates.
    per_b = (2 * klp * dp * k_itemsize    # K tile (2 pipeline buffers)
             + 2 * dp * 4                 # hq tile
             + 2 * 128 * 4                # out tile (lane-padded K_len)
             + 3 * klp * dp * 4)          # h / hc / hn f32 intermediates
    fixed = (2 * (pl.cdiv(D, 8) * 8) * dp * k_itemsize   # resident W1_k^T (2 buffers)
             + 2 * 8 * dp * 4                            # packed vectors
             + (2 << 20))                                # slack
    avail = max(tile_budget - fixed, 8 * per_b)
    bt = _round8(min(avail // per_b, max(8, 2048 // K_len)))
    if B <= bt:
        if B >= 16:
            # Guarantee >= 2 grid steps so the parallel axis spans both v7x TensorCores.
            bt = min(bt, _round8((B + 1) // 2 + 7))
        else:
            bt = B
    return int(bt)


def attn_score_concat(Q, K, params, b_tile=None):
    """Q: (B, 1, D), K: (B, K_len, D) -> scores (B, K_len)."""
    B, K_len, D = K.shape
    w1q, w1k, b1, vecs = params

    # Q-side half of Linear(2D->D) (tiny (B,D)@(D,D)); bias folded in here so the
    # kernel only carries the K-side weight.
    hq = (jnp.dot(Q[:, 0, :], w1q, preferred_element_type=jnp.float32)
          + b1).astype(jnp.float32)

    vmem_limit, tile_budget = _vmem_budget()
    if b_tile is None:
        b_tile = _pick_b_tile(B, K_len, D, K.dtype.itemsize, tile_budget)
    n_blocks = pl.cdiv(B, b_tile)

    out = pl.pallas_call(
        _score_kernel,
        out_shape=jax.ShapeDtypeStruct((B, K_len), jnp.float32),
        grid_spec=pltpu.PrefetchScalarGridSpec(
            num_scalar_prefetch=0,
            grid=(n_blocks,),
            in_specs=[
                pl.BlockSpec((b_tile, D), lambda b: (b, 0)),            # hq (sublane-dense)
                pl.BlockSpec((b_tile, K_len, D), lambda b: (b, 0, 0)),  # K tile
                pl.BlockSpec((D, D), lambda b: (0, 0)),                 # W1_k^T (resident)
                pl.BlockSpec((4, D), lambda b: (0, 0)),                 # [gamma; beta; w2; b2]
            ],
            out_specs=pl.BlockSpec((b_tile, K_len), lambda b: (b, 0)),
        ),
        compiler_params=pltpu.CompilerParams(
            dimension_semantics=("parallel",),
            vmem_limit_bytes=int(vmem_limit),
        ),
    )(hq, K, w1k, vecs)
    return out   # ragged last-block writes are dropped, so this is exactly (B, K_len)


def init_params(key, D, matmul_dtype=jnp.float32):
    """Parameter init matching the PyTorch module shapes.

    PyTorch Linear(2D, D): weight (D, 2D), bias (D,)
    PyTorch LayerNorm(D):  gamma (D,), beta (D,)
    PyTorch Linear(D, 1):  weight (1, D), bias (1,)
    The first linear is pre-split/pre-transposed for `x @ W`; the per-feature vectors
    are packed into one (4, D) slab so the kernel sees a single small VMEM block.
    `matmul_dtype` lets callers hold W1_k (and K) in bf16 to halve HBM traffic.
    """
    k1, k2, k3, k4 = jax.random.split(key, 4)
    lim1 = 1.0 / np.sqrt(2 * D)
    W1 = jax.random.uniform(k1, (D, 2 * D), jnp.float32, -lim1, lim1)   # (out, in)
    b1 = jax.random.uniform(k2, (D,), jnp.float32, -lim1, lim1)
    lim2 = 1.0 / np.sqrt(D)
    W2 = jax.random.uniform(k3, (1, D), jnp.float32, -lim2, lim2)
    b2 = jax.random.uniform(k4, (1,), jnp.float32, -lim2, lim2)
    gamma = jnp.ones((D,), jnp.float32)
    beta = jnp.zeros((D,), jnp.float32)

    w1q = jnp.transpose(W1[:, :D])                        # (D, D): Q @ w1q
    w1k = jnp.transpose(W1[:, D:]).astype(matmul_dtype)   # (D, D): K @ w1k
    vecs = jnp.stack(
        [gamma, beta, W2[0], jnp.full((D,), b2[0], jnp.float32)], axis=0)  # (4, D)
    return (w1q, w1k, b1, vecs)


def reference(Q, K, params):
    """Plain-JAX reference of the PyTorch forward (eval mode)."""
    w1q, w1k, b1, vecs = params
    gamma, beta, w2, b2row = vecs
    b2 = b2row[0]
    h = (jnp.einsum("bqd,de->bqe", Q.astype(jnp.float32), w1q)
         + jnp.einsum("bkd,de->bke", K.astype(jnp.float32), w1k.astype(jnp.float32))
         + b1)
    mean = jnp.mean(h, -1, keepdims=True)
    var = jnp.mean((h - mean) ** 2, -1, keepdims=True)
    hn = (h - mean) / jnp.sqrt(var + LN_EPS) * gamma + beta
    hr = jnp.maximum(hn, 0.0)
    return jnp.einsum("bkd,d->bk", hr, w2) + b2


if __name__ == "__main__":
    key = jax.random.PRNGKey(0)
    # Small primary case + a multi-block case + a ragged-batch (non-divisible) case.
    for (B, K_len, D) in [(2, 8, 32), (48, 8, 32), (20, 8, 32)]:
        kq, kk, kp, key = jax.random.split(key, 4)
        Q = jax.random.normal(kq, (B, 1, D), jnp.float32)
        K = jax.random.normal(kk, (B, K_len, D), jnp.float32)
        params = init_params(kp, D)

        scores = jax.block_until_ready(attn_score_concat(Q, K, params))
        ref = reference(Q, K, params)
        assert scores.shape == (B, K_len)
        np.testing.assert_allclose(np.asarray(scores), np.asarray(ref),
                                   rtol=1e-5, atol=1e-5)
    print("KERNEL_OK")
</pallas_src>

<mosaic_0001>
module attributes {stable_mosaic.version = 11 : i64} {
  func.func @_score_kernel(%arg0: i32, %arg1: memref<2x32xf32, #tpu.memory_space<vmem>>, %arg2: memref<2x8x32xf32, #tpu.memory_space<vmem>>, %arg3: memref<32x32xf32, #tpu.memory_space<vmem>>, %arg4: memref<4x32xf32, #tpu.memory_space<vmem>>, %arg5: memref<2x8xf32, #tpu.memory_space<vmem>>) attributes {dimension_semantics = [#tpu.dimension_semantics<parallel>], iteration_bounds = array<i64: 1>, scalar_prefetch = 0 : i64, scratch_operands = 0 : i64, tpu.core_type = #tpu.core_type<tc>, window_params = [{transform_indices = @transform_0, window_bounds = array<i64: 2, 32>}, {transform_indices = @transform_1, window_bounds = array<i64: 2, 8, 32>}, {pipeline_mode = #tpu.pipeline_mode<synchronous>, transform_indices = @transform_2, window_bounds = array<i64: 32, 32>}, {pipeline_mode = #tpu.pipeline_mode<synchronous>, transform_indices = @transform_3, window_bounds = array<i64: 4, 32>}, {transform_indices = @transform_4, window_bounds = array<i64: 2, 8>}]} {
    %c0 = arith.constant 0 : index
    %c0_0 = arith.constant 0 : index
    %0 = vector.load %arg4[%c0, %c0_0] : memref<4x32xf32, #tpu.memory_space<vmem>>, vector<1x32xf32>
    %c1 = arith.constant 1 : index
    %c0_1 = arith.constant 0 : index
    %1 = vector.load %arg4[%c1, %c0_1] : memref<4x32xf32, #tpu.memory_space<vmem>>, vector<1x32xf32>
    %c2 = arith.constant 2 : index
    %c0_2 = arith.constant 0 : index
    %2 = vector.load %arg4[%c2, %c0_2] : memref<4x32xf32, #tpu.memory_space<vmem>>, vector<1x32xf32>
    %c3 = arith.constant 3 : index
    %c0_3 = arith.constant 0 : index
    %3 = vector.load %arg4[%c3, %c0_3] : memref<4x32xf32, #tpu.memory_space<vmem>>, vector<1x1xf32>
    %c0_4 = arith.constant 0 : index
    %c0_5 = arith.constant 0 : index
    %c0_6 = arith.constant 0 : index
    %4 = vector.load %arg2[%c0_4, %c0_5, %c0_6] : memref<2x8x32xf32, #tpu.memory_space<vmem>>, vector<2x8x32xf32>
    %5 = vector.shape_cast %4 : vector<2x8x32xf32> to vector<16x32xf32>
    %c0_7 = arith.constant 0 : index
    %c0_8 = arith.constant 0 : index
    %6 = vector.load %arg3[%c0_7, %c0_8] : memref<32x32xf32, #tpu.memory_space<vmem>>, vector<32x32xf32>
    %cst = arith.constant dense<0.000000e+00> : vector<16x32xf32>
    %7 = tpu.matmul %5, %6, %cst {dimension_numbers = #tpu.dot_dimension_numbers<[1], [0], [0], [1], [0, 0, 1, 1], [], []>} : vector<16x32xf32>, vector<32x32xf32>, vector<16x32xf32> -> vector<16x32xf32>
    %8 = vector.shape_cast %7 : vector<16x32xf32> to vector<2x8x32xf32>
    %c0_9 = arith.constant 0 : index
    %c0_10 = arith.constant 0 : index
    %9 = vector.load %arg1[%c0_9, %c0_10] : memref<2x32xf32, #tpu.memory_space<vmem>>, vector<2x32xf32>
    %10 = vector.shape_cast %9 : vector<2x32xf32> to vector<2x1x32xf32>
    %11 = vector.broadcast %10 : vector<2x1x32xf32> to vector<2x8x32xf32>
    %12 = arith.addf %8, %11 : vector<2x8x32xf32>
    %cst_11 = arith.constant dense<0.000000e+00> : vector<2x8xf32>
    %13 = vector.multi_reduction <add>, %12, %cst_11 [2] : vector<2x8x32xf32> to vector<2x8xf32>
    %14 = vector.shape_cast %13 : vector<2x8xf32> to vector<2x8x1xf32>
    %cst_12 = arith.constant 3.200000e+01 : f32
    %15 = vector.broadcast %cst_12 : f32 to vector<2x8x1xf32>
    %16 = arith.divf %14, %15 : vector<2x8x1xf32>
    %17 = vector.broadcast %16 : vector<2x8x1xf32> to vector<2x8x32xf32>
    %18 = arith.subf %12, %17 : vector<2x8x32xf32>
    %19 = arith.mulf %18, %18 : vector<2x8x32xf32>
    %cst_13 = arith.constant dense<0.000000e+00> : vector<2x8xf32>
    %20 = vector.multi_reduction <add>, %19, %cst_13 [2] : vector<2x8x32xf32> to vector<2x8xf32>
    %21 = vector.shape_cast %20 : vector<2x8xf32> to vector<2x8x1xf32>
    %cst_14 = arith.constant 3.200000e+01 : f32
    %22 = vector.broadcast %cst_14 : f32 to vector<2x8x1xf32>
    %23 = arith.divf %21, %22 : vector<2x8x1xf32>
    %cst_15 = arith.constant 9.99999974E-6 : f32
    %24 = vector.broadcast %cst_15 : f32 to vector<2x8x1xf32>
    %25 = arith.addf %23, %24 : vector<2x8x1xf32>
    %26 = math.rsqrt %25 : vector<2x8x1xf32>
    %27 = vector.broadcast %26 : vector<2x8x1xf32> to vector<2x8x32xf32>
    %28 = arith.mulf %18, %27 : vector<2x8x32xf32>
    %29 = vector.shape_cast %0 : vector<1x32xf32> to vector<1x1x32xf32>
    %30 = vector.broadcast %29 : vector<1x1x32xf32> to vector<2x8x32xf32>
    %31 = arith.mulf %28, %30 : vector<2x8x32xf32>
    %32 = vector.shape_cast %1 : vector<1x32xf32> to vector<1x1x32xf32>
    %33 = vector.broadcast %32 : vector<1x1x32xf32> to vector<2x8x32xf32>
    %34 = arith.addf %31, %33 : vector<2x8x32xf32>
    %cst_16 = arith.constant 0.000000e+00 : f32
    %35 = vector.broadcast %cst_16 : f32 to vector<2x8x32xf32>
    %36 = arith.maximumf %34, %35 : vector<2x8x32xf32>
    %37 = vector.shape_cast %2 : vector<1x32xf32> to vector<1x1x32xf32>
    %38 = vector.broadcast %37 : vector<1x1x32xf32> to vector<2x8x32xf32>
    %39 = arith.mulf %36, %38 : vector<2x8x32xf32>
    %cst_17 = arith.constant dense<0.000000e+00> : vector<2x8xf32>
    %40 = vector.multi_reduction <add>, %39, %cst_17 [2] : vector<2x8x32xf32> to vector<2x8xf32>
    %41 = vector.broadcast %3 : vector<1x1xf32> to vector<2x8xf32>
    %42 = arith.addf %40, %41 : vector<2x8xf32>
    %c0_18 = arith.constant 0 : index
    %c0_19 = arith.constant 0 : index
    %43 = vector.load %arg5[%c0_18, %c0_19] : memref<2x8xf32, #tpu.memory_space<vmem>>, vector<2x8xf32>
    tpu.vector_store %arg5[%c0_18, %c0_19], %42 {strides = array<i32>} : memref<2x8xf32, #tpu.memory_space<vmem>>, vector<2x8xf32>,
    return
  }
  func.func @transform_0(%arg0: i32) -> (i32, i32) {
    %c0_i32 = arith.constant 0 : i32
    %c0_i32_0 = arith.constant 0 : i32
    return %arg0, %c0_i32 : i32, i32
  }
  func.func @transform_1(%arg0: i32) -> (i32, i32, i32) {
    %c0_i32 = arith.constant 0 : i32
    %c0_i32_0 = arith.constant 0 : i32
    %c0_i32_1 = arith.constant 0 : i32
    return %arg0, %c0_i32, %c0_i32_0 : i32, i32, i32
  }
  func.func @transform_2(%arg0: i32) -> (i32, i32) {
    %c0_i32 = arith.constant 0 : i32
    %c0_i32_0 = arith.constant 0 : i32
    %c0_i32_1 = arith.constant 0 : i32
    return %c0_i32, %c0_i32_0 : i32, i32
  }
  func.func @transform_3(%arg0: i32) -> (i32, i32) {
    %c0_i32 = arith.constant 0 : i32
    %c0_i32_0 = arith.constant 0 : i32
    %c0_i32_1 = arith.constant 0 : i32
    return %c0_i32, %c0_i32_0 : i32, i32
  }
  func.func @transform_4(%arg0: i32) -> (i32, i32) {
    %c0_i32 = arith.constant 0 : i32
    %c0_i32_0 = arith.constant 0 : i32
    return %arg0, %c0_i32 : i32, i32
  }
}

</mosaic_0001>

<llo_original>
// kernel: tpu_custom_call.1
$region0: #{tpu_custom_call.1}
  #allocation0 [shape = 'u32[]', space=smem, size = 0x4, offset = 0x4, fixed_abs, tag = 'smem constant byte address 0x4 - core index']
  #allocation1 [shape = 'u32[72,128]{1,0:T(1,128)}', space=vmem, size = 0x9000, scoped, tag = 'internal scratch']
  %s0 = inlined_call_operand.hbm [shape: f32[2,32], index: 0, kind: input, shape index: {}]
  %s1 = inlined_call_operand.hbm [shape: f32[2,8,32], index: 1, kind: input, shape index: {}]
  %s2 = inlined_call_operand.hbm [shape: f32[32,32], index: 2, kind: input, shape index: {}]
  %s3 = inlined_call_operand.hbm [shape: f32[4,32], index: 3, kind: input, shape index: {}]
  %s4 = inlined_call_operand.hbm [shape: f32[2,8], index: 4, kind: output, shape index: {}]
  %s5 = sld [smem:[#allocation0]]
  $region42: #{tpu_custom_call.1} parent=0
    _
  %s7 = ssub.s32 1, %s5
  %s8 = scalar_select 0, %s7, %s5
  $region1: #{tpu_custom_call.1} parent=0
    #allocation2 [shape = 'u8[1024]{0}', space=vmem, size = 0x400, scoped, tag = 'input window, operand 0, single buffered']
    #allocation3 [shape = 's32[1]{0}', space=sflag, size = 0x4, scoped, tag = 'scoped memory for tpu_custom_call.1']
    #allocation4 [shape = 's32[1]{0}', space=sflag, size = 0x4, scoped, tag = 'scoped memory for tpu_custom_call.1']
    #allocation5 [shape = 'u8[8192]{0}', space=vmem, size = 0x2000, scoped, tag = 'input window, operand 1, single buffered']
    #allocation6 [shape = 's32[1]{0}', space=sflag, size = 0x4, scoped, tag = 'scoped memory for tpu_custom_call.1']
    #allocation7 [shape = 'u8[16384]{0}', space=vmem, size = 0x4000, scoped, tag = 'input window, operand 2, single buffered']
    #allocation8 [shape = 'u8[2048]{0}', space=vmem, size = 0x800, scoped, tag = 'input window, operand 3, single buffered']
    #allocation9 [shape = 's32[1]{0}', space=sflag, size = 0x4, scoped, tag = 'scoped memory for tpu_custom_call.1']
    #allocation10 [shape = 'u8[1024]{0}', space=vmem, size = 0x400, scoped, tag = 'output window, operand 0, single buffered']
    %9 = vsyncpa [#allocation3], 0
    %10 = vsyncpa [#allocation6], 0
    %11 = vsyncpa [#allocation9], 0
    %12 = vsyncpa [#allocation4], 0
    // Predicated region
    $region2: #{tpu_custom_call.1} parent=1 // pred_check
      _
    $region3: #{tpu_custom_call.1} parent=1 // pred_check_branch
      %14 = sbr.rel (0) target = $region5
    $region4: #{tpu_custom_call.1} parent=1 // pred_region
      %16 = vsyncadd [#allocation3], 0
      %s18 = sshll.u32 %s0, 4
      %s19 = int_to_ptr.hbm [resolvable:$true] %s18
      %s20 = sshll.u32 [#allocation2], 4
      %s21 = int_to_ptr.vmem [resolvable:$true] %s20
      %23 = dma.hbm_to_vmem [thread:$0]  %s19, 32, %s21, [#allocation3]
    $region5: #{tpu_custom_call.1} parent=1 // pred_fallthru
      _
    // Predicated region
    $region6: #{tpu_custom_call.1} parent=1 // pred_check
      _
    $region7: #{tpu_custom_call.1} parent=1 // pred_check_branch
      %25 = sbr.rel (0) target = $region9
    $region8: #{tpu_custom_call.1} parent=1 // pred_region
      %27 = vsyncadd [#allocation6], 0
      %s28 = sshll.u32 %s1, 4
      %s29 = int_to_ptr.hbm [resolvable:$true] %s28
      %s30 = sshll.u32 [#allocation5], 4
      %s31 = int_to_ptr.vmem [resolvable:$true] %s30
      %36 = dma.hbm_to_vmem [thread:$0]  %s29, 256, %s31, [#allocation6], 128, 128, 8
    $region9: #{tpu_custom_call.1} parent=1 // pred_fallthru
      _
    // Predicated region
    $region10: #{tpu_custom_call.1} parent=1 // pred_check
      _
    $region11: #{tpu_custom_call.1} parent=1 // pred_check_branch
      %38 = sbr.rel (0) target = $region13
    $region12: #{tpu_custom_call.1} parent=1 // pred_region
      %40 = vsyncadd [#allocation6], 0
      %s41 = sshll.u32 %s2, 4
      %s42 = int_to_ptr.hbm [resolvable:$true] %s41
      %s43 = sshll.u32 [#allocation7], 4
      %s44 = int_to_ptr.vmem [resolvable:$true] %s43
      %49 = dma.hbm_to_vmem [thread:$0]  %s42, 512, %s44, [#allocation6], 128, 128, 8
    $region13: #{tpu_custom_call.1} parent=1 // pred_fallthru
      _
    // Predicated region
    $region14: #{tpu_custom_call.1} parent=1 // pred_check
      _
    $region15: #{tpu_custom_call.1} parent=1 // pred_check_branch
      %51 = sbr.rel (0) target = $region17
    $region16: #{tpu_custom_call.1} parent=1 // pred_region
      %53 = vsyncadd [#allocation9], 0
      %s55 = sshll.u32 %s3, 4
      %s56 = int_to_ptr.hbm [resolvable:$true] %s55
      %s57 = sshll.u32 [#allocation8], 4
      %s58 = int_to_ptr.vmem [resolvable:$true] %s57
      %60 = dma.hbm_to_vmem [thread:$0]  %s56, 64, %s58, [#allocation9]
    $region17: #{tpu_custom_call.1} parent=1 // pred_fallthru
      _
    // Predicated region
    $region18: #{tpu_custom_call.1} parent=1 // pred_check
      _
    $region19: #{tpu_custom_call.1} parent=1 // pred_check_branch
      %62 = sbr.rel (0) target = $region21
    $region20: #{tpu_custom_call.1} parent=1 // pred_region
      %64 = dma.done [#allocation3], 32
    $region21: #{tpu_custom_call.1} parent=1 // pred_fallthru
      _
    // Predicated region
    $region22: #{tpu_custom_call.1} parent=1 // pred_check
      _
    $region23: #{tpu_custom_call.1} parent=1 // pred_check_branch
      %66 = sbr.rel (0) target = $region25
    $region24: #{tpu_custom_call.1} parent=1 // pred_region
      %68 = dma.done [#allocation6], 256
    $region25: #{tpu_custom_call.1} parent=1 // pred_fallthru
      _
    // Predicated region
    $region26: #{tpu_custom_call.1} parent=1 // pred_check
      _
    $region27: #{tpu_custom_call.1} parent=1 // pred_check_branch
      %70 = sbr.rel (0) target = $region29
    $region28: #{tpu_custom_call.1} parent=1 // pred_region
      %72 = dma.done [#allocation6], 512
    $region29: #{tpu_custom_call.1} parent=1 // pred_fallthru
      _
    // Predicated region
    $region30: #{tpu_custom_call.1} parent=1 // pred_check
      _
    $region31: #{tpu_custom_call.1} parent=1 // pred_check_branch
      %74 = sbr.rel (0) target = $region33
    $region32: #{tpu_custom_call.1} parent=1 // pred_region
      %76 = dma.done [#allocation9], 64
    $region33: #{tpu_custom_call.1} parent=1 // pred_fallthru
      _
    %v77 = vld [vmem:[#allocation8] sm:$0x1]
    %v78 = vld [vmem:[#allocation8 + $0x1] sm:$0x1]
    %v79 = vld [vmem:[#allocation8 + $0x2] sm:$0x1]
    %v80 = vld [vmem:[#allocation8 + $0x3] sm:$0x1]
    %v81 = vld [vmem:[#allocation5] sm:$0xff]
    %v82 = vld [vmem:[#allocation5 + $0x8] sm:$0xff]
    %v83 = vld [vmem:[#allocation7] sm:$0xff]
    %v84 = vld [vmem:[#allocation7 + $0x8] sm:$0xff]
    %v85 = vld [vmem:[#allocation7 + $0x10] sm:$0xff]
    %v86 = vld [vmem:[#allocation7 + $0x18] sm:$0xff]
    %vm87 = vcmask 261120
    %v89 = vsel %vm87, %v81, 0
    %v92 = vsel %vm87, %v82, 0
    %94 = vmatpush.msra.mxu0 0.0
    %95 = vmatpush.msra.mxu0 0.0
    %96 = vmatpush.msra.mxu0 0.0
    %97 = vmatpush.msra.mxu0 0.0
    %98 = vmatpush.msra.mxu0 0.0
    %99 = vmatpush.msra.mxu0 0.0
    %100 = vmatpush.msra.mxu0 0.0
    %101 = vmatpush.msra.mxu0 0.0
    %102 = vmatpush.msra.mxu0 0.0
    %103 = vmatpush.msra.mxu0 0.0
    %104 = vmatpush.msra.mxu0 0.0
    %105 = vmatpush.msra.mxu0 0.0
    %106 = vmatpush.msra.mxu0 %v86
    %107 = vmatpush.msra.mxu0 %v85
    %108 = vmatpush.msra.mxu0 %v84
    %109 = vmatpush.msra.mxu0 %v83
    %110 = vmatmul.f32.gmra.mxu0 %v89
    %v111 = vpop.f32.mrf.mxu0
    %v112 = vadd.f32 0.0, %v111
    %113 = vmatmul.f32.gmra.mxu0 %v92
    %v114 = vpop.f32.mrf.mxu0
    %v115 = vadd.f32 0.0, %v114
    %116 = vdwg.mxu0
    %v117 = vld [vmem:[#allocation2] sm:$0x3]
    %v119 = vrot.slane %v117, 1
    %v120 = vperm.slane %v117, 0
    %v121 = vperm.slane %v119, 0
    %v124 = vadd.f32 %v112, %v120
    %v125 = vadd.f32 %v115, %v121
    %v126 = vsel %vm87, %v124, 0.0
    %127 = vadd.xlane.f32.xlu0 %v126
    %v128 = vpop.xlane.xlu0 %127
    %v129 = vsel %vm87, %v125, 0.0
    %130 = vadd.xlane.f32.xlu0 %v129
    %v131 = vpop.xlane.xlu0 %130
    %v132 = vrcp.pop 32.0
    %v133 = vmul.f32 32.0, %v132
    %v134 = vsub.f32 1.0, %v133
    %v135 = vmul.f32 %v132, %v134
    %v136 = vadd.f32 %v132, %v135
    %vm137 = vweird.f32 %v132
    %v138 = vsel %vm137, %v132, %v136
    %v139 = vmul.f32 %v128, %v138
    %v140 = vmul.f32 %v131, %v138
    %v141 = vsub.f32 %v124, %v139
    %v142 = vsub.f32 %v125, %v140
    %v143 = vmul.f32 %v141, %v141
    %v144 = vmul.f32 %v142, %v142
    %v145 = vsel %vm87, %v143, 0.0
    %146 = vadd.xlane.f32.xlu0 %v145
    %v147 = vpop.xlane.xlu0 %146
    %v148 = vsel %vm87, %v144, 0.0
    %149 = vadd.xlane.f32.xlu0 %v148
    %v150 = vpop.xlane.xlu0 %149
    %v151 = vmul.f32 %v147, %v138
    %v152 = vmul.f32 %v150, %v138
    %v153 = vadd.f32 %v151, 1e-05
    %v154 = vadd.f32 %v152, 1e-05
    %v155 = vrsqrt.pop %v153
    %v156 = vmul.f32 %v155, %v153
    %v157 = vmul.f32 %v156, %v155
    %v158 = vmul.f32 0.5, %v157
    %v159 = vsub.f32 1.5, %v158
    %v160 = vmul.f32 %v155, %v159
    %vm161 = vweird.f32 %v153
    %vm162 = vweird.f32 %v155
    %vm163 = vmor %vm161, %vm162
    %v164 = vsel %vm163, %v155, %v160
    %v165 = vrsqrt.pop %v154
    %v166 = vmul.f32 %v165, %v154
    %v167 = vmul.f32 %v166, %v165
    %v168 = vmul.f32 0.5, %v167
    %v169 = vsub.f32 1.5, %v168
    %v170 = vmul.f32 %v165, %v169
    %vm171 = vweird.f32 %v154
    %vm172 = vweird.f32 %v165
    %vm173 = vmor %vm171, %vm172
    %v174 = vsel %vm173, %v165, %v170
    %v175 = vmul.f32 %v141, %v164
    %v176 = vmul.f32 %v142, %v174
    %v177 = vperm.slane %v77, 0
    %v178 = vmul.f32 %v175, %v177
    %v179 = vmul.f32 %v176, %v177
    %v180 = vperm.slane %v78, 0
    %v181 = vadd.f32 %v178, %v180
    %v182 = vadd.f32 %v179, %v180
    %v183 = vmax.f32 %v181, 0.0
    %v184 = vmax.f32 %v182, 0.0
    %v185 = vperm.slane %v79, 0
    %v186 = vmul.f32 %v183, %v185
    %v187 = vmul.f32 %v184, %v185
    %v188 = vsel %vm87, %v186, 0.0
    %189 = vadd.xlane.f32.xlu0 %v188
    %v190 = vpop.xlane.xlu0 %189
    %v191 = vsel %vm87, %v187, 0.0
    %192 = vadd.xlane.f32.xlu0 %v191
    %v193 = vpop.xlane.xlu0 %192
    %s195 = vtos %v80
    %v196 = vstv %s195
    %v198 = vadd.f32 %v190, %v196
    %v199 = vadd.f32 %v193, %v196
    %v202 = vlaneseq
    %v203 = vand.u32 %v202, 127
    %v204 = vperm.slane %v198, %v203
    %v205 = vperm.slane %v199, %v203
    %vm206 = vcmask 1041409
    %v207 = vsel %vm206, %v205, %v204
    %vm209 = vcmask 58368
    %210 = vst.msk [vmem:[#allocation10] sm:$0x3] %vm209, %v207
    // Predicated region
    $region34: #{tpu_custom_call.1} parent=1 // pred_check
      _
    $region35: #{tpu_custom_call.1} parent=1 // pred_check_branch
      %212 = sbr.rel (0) target = $region37
    $region36: #{tpu_custom_call.1} parent=1 // pred_region
      %214 = vsyncadd [#allocation4], 0
      %s216 = sshll.u32 [#allocation10], 4
      %s217 = int_to_ptr.vmem [resolvable:$true] %s216
      %s218 = sshll.u32 %s4, 4
      %s219 = int_to_ptr.hbm [resolvable:$true] %s218
      %221 = dma.vmem_to_hbm [thread:$0]  %s217, 32, %s219, [#allocation4]
    $region37: #{tpu_custom_call.1} parent=1 // pred_fallthru
      _
    // Predicated region
    $region38: #{tpu_custom_call.1} parent=1 // pred_check
      _
    $region39: #{tpu_custom_call.1} parent=1 // pred_check_branch
      %223 = sbr.rel (0) target = $region41
    $region40: #{tpu_custom_call.1} parent=1 // pred_region
      %225 = dma.done [#allocation4], 32
    $region41: #{tpu_custom_call.1} parent=1 // pred_fallthru
      _
    %226 = vsyncpa [#allocation3], 1
    %227 = vsyncpa [#allocation6], 1
    %228 = vsyncpa [#allocation9], 1
    %229 = vsyncpa [#allocation4], 1

</llo_original>
